<compile_context>
chip_gen: v7x
topology: tpu7x:2x2x1
jax: 0.10.0
libtpu: 0.0.40
codegen_flags: <defaults>
</compile_context>

<pallas_src>
import functools

import jax
import jax.numpy as jnp
from jax.experimental import pallas as pl
from jax.experimental.pallas import tpu as pltpu

LN_EPS = 1e-5  # PyTorch nn.LayerNorm default eps


def patch_expansion_kernel(xt_ref, wec_ref, wzc_ref, gm_ref, e_ref, bias_ref, o_ref):
    """One tile of TM tokens, fully fused, tokens in the lane dimension.

    xt_ref  : [C, TM]            input tokens, pre-transposed (bf16 or f32)
    wec_ref : [ds2*C, C]         centered expand weights (group mean folded out)
    wzc_ref : [ds2*Cout, C]      folded (mean-sub + LN affine + 1x1 conv) weights
    gm_ref  : [ds2, ds2*C]       per-subpixel 1/C averaging matrix (variance)
    e_ref   : [ds2*Cout, ds2]    expands per-group inv_std to per-output-row
    bias_ref: [ds2*Cout, 1]      conv1x1 @ beta (folded LayerNorm bias)
    o_ref   : [ds2*Cout, TM]     output, tokens in lanes (single lane-dense store)
    """
    xt = xt_ref[...]                                                    # [C, TM]

    # Centered expand: yc = (we - group_mean(we)) @ x^T  -> already LN-centered.
    yc = jnp.dot(wec_ref[...], xt, preferred_element_type=jnp.float32)  # [ds2*C, TM]

    # Mean subtraction + LN affine + 1x1 conv, all folded into one small matmul
    # straight from x (independent of yc -> can issue back-to-back on the MXU).
    zc = jnp.dot(wzc_ref[...], xt, preferred_element_type=jnp.float32)  # [ds2*Cout, TM]

    # Per-subpixel variance: group mean of squared deviations (no cancellation).
    var = jnp.dot(gm_ref[...], yc * yc,
                  preferred_element_type=jnp.float32)                   # [ds2, TM]
    inv_std = jax.lax.rsqrt(var + LN_EPS)                               # [ds2, TM] (EUP)

    # Broadcast per-group inv_std to each group's Cout output rows.
    inv_e = jnp.dot(e_ref[...], inv_std,
                    preferred_element_type=jnp.float32)                 # [ds2*Cout, TM]

    o_ref[...] = (inv_e * zc + bias_ref[...]).astype(o_ref.dtype)       # lane-dense vst


def prepare_patch_expansion_params(we, gamma, beta, wc, *, dim_scale):
    """One-time offline weight folding (run OUTSIDE the jitted forward).

    we    : [ds^2*C, C]      nn.Linear(C, ds^2*C, bias=False).weight
    gamma : [C]              LayerNorm weight
    beta  : [C]              LayerNorm bias
    wc    : [Cout, C, 1, 1]  nn.Conv2d(C, Cout, 1, bias=False).weight
    """
    ds2 = dim_scale * dim_scale
    Cout, C = wc.shape[0], wc.shape[1]
    assert we.shape == (ds2 * C, C)

    f32 = jnp.float32
    we = we.astype(f32)
    wc_r = wc.reshape(Cout, C).astype(f32)
    gamma = gamma.astype(f32)
    beta = beta.astype(f32)

    eye = jnp.eye(ds2, dtype=f32)
    gm = jnp.kron(eye, jnp.ones((1, C), f32) / C)                 # [ds2, ds2*C]
    e = jnp.kron(eye, jnp.ones((Cout, 1), f32))                   # [ds2*Cout, ds2]
    wgc = wc_r * gamma[None, :]                                   # [Cout, C]
    wbd = jnp.kron(eye, wgc)                                      # [ds2*Cout, ds2*C]

    wm = gm @ we                                                  # [ds2, C] group-mean weights
    wec = we - jnp.kron(eye, jnp.ones((C, 1), f32)) @ wm          # [ds2*C, C] centered expand
    wzc = wbd @ wec                                               # [ds2*Cout, C] folded LN+conv
    bias = jnp.tile(wc_r @ beta, ds2).reshape(ds2 * Cout, 1)      # [ds2*Cout, 1]

    return {"wec": wec, "wzc": wzc, "gm": gm, "e": e, "bias": bias}


def patch_expansion(x, params, *, dim_scale, tm=4096,
                    compute_dtype=jnp.bfloat16, output_layout="nchw"):
    """x: [B, H, W, C] (channels-last, as the PyTorch forward expects).

    output_layout="nchw"   -> [B, Cout, H*ds, W*ds]  (module semantics, default)
    output_layout="tokens" -> kernel-native [ds2*Cout, N] (rows (p1,p2,o), cols
                              (b,h,w)); skips the post-kernel pixel-shuffle
                              transpose when the consumer can take this layout.
    """
    B, H, W, C = x.shape
    ds = dim_scale
    ds2 = ds * ds
    Cout = params["wzc"].shape[0] // ds2
    N = B * H * W

    # Token tile: large (amortizes ~0.35us/step grid overhead, worst on v7x) and a
    # multiple of 128 so the output block is lane-dense.  VMEM at tm=4096, C=32 is
    # ~1 MiB of blocks + a few MiB of temporaries -- far under every generation's
    # scoped limit (incl. v7x's smaller VMEM).
    tm = max(128, 128 * (tm // 128))
    if N <= tm:
        tm_eff = N
        # Keep 2 lane-dense grid steps when cleanly possible so both v7x
        # TensorCores get work (no-op on single-TC v5e/v6e).
        if N >= 256 and N % 256 == 0:
            tm_eff = N // 2
    else:
        tm_eff = tm                      # last block padded by Pallas if N % tm
    grid = (pl.cdiv(N, tm_eff),)

    # Tokens-in-lanes input: reshape + cast + transpose fuse into one XLA pass,
    # so the kernel never relayouts the streamed operand.
    xt = x.reshape(N, C).astype(compute_dtype).T                  # [C, N]

    wec = params["wec"].astype(compute_dtype)   # big-matmul operands only
    wzc = params["wzc"].astype(compute_dtype)
    gm, e, bias = params["gm"], params["e"], params["bias"]       # stats stay f32

    out_t = pl.pallas_call(
        patch_expansion_kernel,
        out_shape=jax.ShapeDtypeStruct((ds2 * Cout, N), jnp.float32),
        grid_spec=pltpu.PrefetchScalarGridSpec(
            num_scalar_prefetch=0,
            grid=grid,
            in_specs=[
                pl.BlockSpec((C, tm_eff), lambda i: (0, i)),            # x^T tokens
                pl.BlockSpec((ds2 * C, C), lambda i: (0, 0)),           # centered expand W
                pl.BlockSpec((ds2 * Cout, C), lambda i: (0, 0)),        # folded LN+conv W
                pl.BlockSpec((ds2, ds2 * C), lambda i: (0, 0)),         # group-mean matrix
                pl.BlockSpec((ds2 * Cout, ds2), lambda i: (0, 0)),      # stat expander
                pl.BlockSpec((ds2 * Cout, 1), lambda i: (0, 0)),        # folded bias
            ],
            out_specs=pl.BlockSpec((ds2 * Cout, tm_eff), lambda i: (0, i)),
        ),
        compiler_params=pltpu.CompilerParams(
            dimension_semantics=("parallel",)),
    )(xt, wec, wzc, gm, e, bias)

    if output_layout == "tokens":
        return out_t

    # Pixel-shuffle reassembly to NCHW (module semantics).  This is a plain XLA
    # transpose outside the kernel; use output_layout="tokens" to avoid it.
    out = out_t.reshape(ds, ds, Cout, B, H, W)        # (p1, p2, o, b, h, w)
    out = out.transpose(3, 2, 4, 0, 5, 1)             # (b, o, h, p1, w, p2)
    return out.reshape(B, Cout, H * ds, W * ds)


def reference(x, we, gamma, beta, wc, *, dim_scale):
    """Pure-JAX reference mirroring the PyTorch forward semantics."""
    B, H, W, C = x.shape
    ds = dim_scale
    Cout = wc.shape[0]
    y = jnp.einsum('bhwc,oc->bhwo', x, we)                 # [B,H,W,ds2*C]
    y = y.reshape(B, H, W, ds, ds, C)                      # (p1 p2 c)
    y = y.transpose(0, 1, 3, 2, 4, 5).reshape(B, H * ds, W * ds, C)
    mean = y.mean(-1, keepdims=True)
    var = ((y - mean) ** 2).mean(-1, keepdims=True)
    n = (y - mean) / jnp.sqrt(var + LN_EPS) * gamma + beta
    out = jnp.einsum('bhwc,oc->bohw', n, wc.reshape(Cout, C))
    return out


if __name__ == "__main__":
    # Small, module-consistent shapes.
    B, H, W = 2, 8, 8
    channel_dim = 32
    dim_scale = 2
    img_channels = 4

    key = jax.random.PRNGKey(0)
    kx, kwe, kg, kb, kwc = jax.random.split(key, 5)

    x = jax.random.normal(kx, (B, H, W, channel_dim), dtype=jnp.float32)
    # nn.Linear(channel_dim, dim_scale**2 * channel_dim, bias=False) weight
    we = jax.random.normal(
        kwe, (dim_scale ** 2 * channel_dim, channel_dim), dtype=jnp.float32
    ) * (1.0 / jnp.sqrt(channel_dim))
    # LayerNorm(channel_dim) affine params (deterministic, non-trivial)
    gamma = 1.0 + 0.1 * jax.random.normal(kg, (channel_dim,), dtype=jnp.float32)
    beta = 0.1 * jax.random.normal(kb, (channel_dim,), dtype=jnp.float32)
    # Conv2d(channel_dim, img_channels, 1, bias=False) weight
    wc = jax.random.normal(
        kwc, (img_channels, channel_dim, 1, 1), dtype=jnp.float32
    ) * (1.0 / jnp.sqrt(channel_dim))

    # One-time offline weight folding, kept outside the jitted forward.
    params = prepare_patch_expansion_params(we, gamma, beta, wc, dim_scale=dim_scale)

    ref = reference(x, we, gamma, beta, wc, dim_scale=dim_scale)

    # f32 operand path: tight correctness check against the reference.
    fwd_f32 = jax.jit(functools.partial(
        patch_expansion, dim_scale=dim_scale, compute_dtype=jnp.float32))
    out_f32 = jax.block_until_ready(fwd_f32(x, params))
    assert out_f32.shape == (B, img_channels, H * dim_scale, W * dim_scale), out_f32.shape
    assert jnp.allclose(out_f32, ref, atol=1e-2, rtol=1e-2), float(
        jnp.max(jnp.abs(out_f32 - ref)))

    # Default path (bf16 MXU operands, f32 accumulation/stats): loose sanity check.
    fwd = jax.jit(functools.partial(patch_expansion, dim_scale=dim_scale))
    out = jax.block_until_ready(fwd(x, params))
    assert out.shape == (B, img_channels, H * dim_scale, W * dim_scale), out.shape
    assert bool(jnp.isfinite(out).all())
    assert float(jnp.max(jnp.abs(out - ref))) < 0.25, float(
        jnp.max(jnp.abs(out - ref)))

    print("KERNEL_OK")
</pallas_src>

<mosaic_0001>
module attributes {stable_mosaic.version = 11 : i64} {
  func.func @patch_expansion_kernel(%arg0: i32, %arg1: memref<32x128xf32, #tpu.memory_space<vmem>>, %arg2: memref<128x32xf32, #tpu.memory_space<vmem>>, %arg3: memref<16x32xf32, #tpu.memory_space<vmem>>, %arg4: memref<4x128xf32, #tpu.memory_space<vmem>>, %arg5: memref<16x4xf32, #tpu.memory_space<vmem>>, %arg6: memref<16x1xf32, #tpu.memory_space<vmem>>, %arg7: memref<16x128xf32, #tpu.memory_space<vmem>>) attributes {dimension_semantics = [#tpu.dimension_semantics<parallel>], iteration_bounds = array<i64: 1>, scalar_prefetch = 0 : i64, scratch_operands = 0 : i64, tpu.core_type = #tpu.core_type<tc>, window_params = [{transform_indices = @transform_0, window_bounds = array<i64: 32, 128>}, {pipeline_mode = #tpu.pipeline_mode<synchronous>, transform_indices = @transform_1, window_bounds = array<i64: 128, 32>}, {pipeline_mode = #tpu.pipeline_mode<synchronous>, transform_indices = @transform_2, window_bounds = array<i64: 16, 32>}, {pipeline_mode = #tpu.pipeline_mode<synchronous>, transform_indices = @transform_3, window_bounds = array<i64: 4, 128>}, {pipeline_mode = #tpu.pipeline_mode<synchronous>, transform_indices = @transform_4, window_bounds = array<i64: 16, 4>}, {pipeline_mode = #tpu.pipeline_mode<synchronous>, transform_indices = @transform_5, window_bounds = array<i64: 16, 1>}, {transform_indices = @transform_6, window_bounds = array<i64: 16, 128>}]} {
    %c0 = arith.constant 0 : index
    %c0_0 = arith.constant 0 : index
    %0 = vector.load %arg1[%c0, %c0_0] : memref<32x128xf32, #tpu.memory_space<vmem>>, vector<32x128xf32>
    %c0_1 = arith.constant 0 : index
    %c0_2 = arith.constant 0 : index
    %1 = vector.load %arg2[%c0_1, %c0_2] : memref<128x32xf32, #tpu.memory_space<vmem>>, vector<128x32xf32>
    %cst = arith.constant dense<0.000000e+00> : vector<128x128xf32>
    %2 = tpu.matmul %1, %0, %cst {dimension_numbers = #tpu.dot_dimension_numbers<[1], [0], [0], [1], [0, 0, 1, 1], [], []>} : vector<128x32xf32>, vector<32x128xf32>, vector<128x128xf32> -> vector<128x128xf32>
    %c0_3 = arith.constant 0 : index
    %c0_4 = arith.constant 0 : index
    %3 = vector.load %arg3[%c0_3, %c0_4] : memref<16x32xf32, #tpu.memory_space<vmem>>, vector<16x32xf32>
    %cst_5 = arith.constant dense<0.000000e+00> : vector<16x128xf32>
    %4 = tpu.matmul %3, %0, %cst_5 {dimension_numbers = #tpu.dot_dimension_numbers<[1], [0], [0], [1], [0, 0, 1, 1], [], []>} : vector<16x32xf32>, vector<32x128xf32>, vector<16x128xf32> -> vector<16x128xf32>
    %c0_6 = arith.constant 0 : index
    %c0_7 = arith.constant 0 : index
    %5 = vector.load %arg4[%c0_6, %c0_7] : memref<4x128xf32, #tpu.memory_space<vmem>>, vector<4x128xf32>
    %6 = arith.mulf %2, %2 : vector<128x128xf32>
    %cst_8 = arith.constant dense<0.000000e+00> : vector<4x128xf32>
    %7 = tpu.matmul %5, %6, %cst_8 {dimension_numbers = #tpu.dot_dimension_numbers<[1], [0], [0], [1], [0, 0, 1, 1], [], []>} : vector<4x128xf32>, vector<128x128xf32>, vector<4x128xf32> -> vector<4x128xf32>
    %cst_9 = arith.constant 9.99999974E-6 : f32
    %8 = vector.broadcast %cst_9 : f32 to vector<4x128xf32>
    %9 = arith.addf %7, %8 : vector<4x128xf32>
    %10 = math.rsqrt %9 : vector<4x128xf32>
    %c0_10 = arith.constant 0 : index
    %c0_11 = arith.constant 0 : index
    %11 = vector.load %arg5[%c0_10, %c0_11] : memref<16x4xf32, #tpu.memory_space<vmem>>, vector<16x4xf32>
    %cst_12 = arith.constant dense<0.000000e+00> : vector<16x128xf32>
    %12 = tpu.matmul %11, %10, %cst_12 {dimension_numbers = #tpu.dot_dimension_numbers<[1], [0], [0], [1], [0, 0, 1, 1], [], []>} : vector<16x4xf32>, vector<4x128xf32>, vector<16x128xf32> -> vector<16x128xf32>
    %13 = arith.mulf %12, %4 : vector<16x128xf32>
    %c0_13 = arith.constant 0 : index
    %c0_14 = arith.constant 0 : index
    %14 = vector.load %arg6[%c0_13, %c0_14] : memref<16x1xf32, #tpu.memory_space<vmem>>, vector<16x1xf32>
    %15 = vector.broadcast %14 : vector<16x1xf32> to vector<16x128xf32>
    %16 = arith.addf %13, %15 : vector<16x128xf32>
    %c0_15 = arith.constant 0 : index
    %c0_16 = arith.constant 0 : index
    %17 = vector.load %arg7[%c0_15, %c0_16] : memref<16x128xf32, #tpu.memory_space<vmem>>, vector<16x128xf32>
    tpu.vector_store %arg7[%c0_15, %c0_16], %16 {strides = array<i32>} : memref<16x128xf32, #tpu.memory_space<vmem>>, vector<16x128xf32>,
    return
  }
  func.func @transform_0(%arg0: i32) -> (i32, i32) {
    %c0_i32 = arith.constant 0 : i32
    %c0_i32_0 = arith.constant 0 : i32
    return %c0_i32, %arg0 : i32, i32
  }
  func.func @transform_1(%arg0: i32) -> (i32, i32) {
    %c0_i32 = arith.constant 0 : i32
    %c0_i32_0 = arith.constant 0 : i32
    %c0_i32_1 = arith.constant 0 : i32
    return %c0_i32, %c0_i32_0 : i32, i32
  }
  func.func @transform_2(%arg0: i32) -> (i32, i32) {
    %c0_i32 = arith.constant 0 : i32
    %c0_i32_0 = arith.constant 0 : i32
    %c0_i32_1 = arith.constant 0 : i32
    return %c0_i32, %c0_i32_0 : i32, i32
  }
  func.func @transform_3(%arg0: i32) -> (i32, i32) {
    %c0_i32 = arith.constant 0 : i32
    %c0_i32_0 = arith.constant 0 : i32
    %c0_i32_1 = arith.constant 0 : i32
    return %c0_i32, %c0_i32_0 : i32, i32
  }
  func.func @transform_4(%arg0: i32) -> (i32, i32) {
    %c0_i32 = arith.constant 0 : i32
    %c0_i32_0 = arith.constant 0 : i32
    %c0_i32_1 = arith.constant 0 : i32
    return %c0_i32, %c0_i32_0 : i32, i32
  }
  func.func @transform_5(%arg0: i32) -> (i32, i32) {
    %c0_i32 = arith.constant 0 : i32
    %c0_i32_0 = arith.constant 0 : i32
    %c0_i32_1 = arith.constant 0 : i32
    return %c0_i32, %c0_i32_0 : i32, i32
  }
  func.func @transform_6(%arg0: i32) -> (i32, i32) {
    %c0_i32 = arith.constant 0 : i32
    %c0_i32_0 = arith.constant 0 : i32
    return %c0_i32, %arg0 : i32, i32
  }
}

</mosaic_0001>

<llo_original>
// kernel: patch_expansion.1
$region0: #{patch_expansion.1}
  #allocation0 [shape = 'u32[]', space=smem, size = 0x4, offset = 0x4, fixed_abs, tag = 'smem constant byte address 0x4 - core index']
  #allocation1 [shape = 'u32[144,128]{1,0:T(1,128)}', space=vmem, size = 0x12000, scoped, tag = 'internal scratch']
  %s0 = inlined_call_operand.vmem [shape: f32[32,128], index: 0, kind: input, shape index: {}]
  %s1 = inlined_call_operand.vmem [shape: f32[128,32], index: 1, kind: input, shape index: {}]
  %s2 = inlined_call_operand.vmem [shape: f32[16,32], index: 2, kind: input, shape index: {}]
  %s3 = inlined_call_operand.vmem [shape: f32[4,128], index: 3, kind: input, shape index: {}]
  %s4 = inlined_call_operand.vmem [shape: f32[16,4], index: 4, kind: input, shape index: {}]
  %s5 = inlined_call_operand.vmem [shape: f32[16,1], index: 5, kind: input, shape index: {}]
  %s6 = inlined_call_operand.vmem [shape: f32[16,128], index: 6, kind: output, shape index: {}]
  %s7 = sld [smem:[#allocation0]]
  $region34: #{patch_expansion.1} parent=0
    _
  %s9 = ssub.s32 1, %s7
  %s10 = scalar_select 0, %s9, %s7
  // Predicated region
  $region2: #{patch_expansion.1} parent=0 // pred_check
    _
  $region3: #{patch_expansion.1} parent=0 // pred_check_branch
    %12 = sbr.rel (0) target = $region5
  $region4: #{patch_expansion.1} parent=0 // pred_region
    _
  $region5: #{patch_expansion.1} parent=0 // pred_fallthru
    _
  // Predicated region
  $region6: #{patch_expansion.1} parent=0 // pred_check
    _
  $region7: #{patch_expansion.1} parent=0 // pred_check_branch
    %14 = sbr.rel (0) target = $region9
  $region8: #{patch_expansion.1} parent=0 // pred_region
    _
  $region9: #{patch_expansion.1} parent=0 // pred_fallthru
    _
  // Predicated region
  $region10: #{patch_expansion.1} parent=0 // pred_check
    _
  $region11: #{patch_expansion.1} parent=0 // pred_check_branch
    %16 = sbr.rel (0) target = $region13
  $region12: #{patch_expansion.1} parent=0 // pred_region
    _
  $region13: #{patch_expansion.1} parent=0 // pred_fallthru
    _
  // Predicated region
  $region14: #{patch_expansion.1} parent=0 // pred_check
    _
  $region15: #{patch_expansion.1} parent=0 // pred_check_branch
    %18 = sbr.rel (0) target = $region17
  $region16: #{patch_expansion.1} parent=0 // pred_region
    _
  $region17: #{patch_expansion.1} parent=0 // pred_fallthru
    _
  // Predicated region
  $region18: #{patch_expansion.1} parent=0 // pred_check
    _
  $region19: #{patch_expansion.1} parent=0 // pred_check_branch
    %20 = sbr.rel (0) target = $region21
  $region20: #{patch_expansion.1} parent=0 // pred_region
    _
  $region21: #{patch_expansion.1} parent=0 // pred_fallthru
    _
  // Predicated region
  $region22: #{patch_expansion.1} parent=0 // pred_check
    _
  $region23: #{patch_expansion.1} parent=0 // pred_check_branch
    %22 = sbr.rel (0) target = $region25
  $region24: #{patch_expansion.1} parent=0 // pred_region
    _
  $region25: #{patch_expansion.1} parent=0 // pred_fallthru
    _
  %v23 = vld [vmem:[%s0] sm:$0xff]
  %v24 = vld [vmem:[%s0 + $0x8] sm:$0xff]
  %v25 = vld [vmem:[%s0 + $0x10] sm:$0xff]
  %v26 = vld [vmem:[%s0 + $0x18] sm:$0xff]
  %v27 = vld [vmem:[%s1] sm:$0xff]
  %v28 = vld [vmem:[%s1 + $0x8] sm:$0xff]
  %v29 = vld [vmem:[%s1 + $0x10] sm:$0xff]
  %v30 = vld [vmem:[%s1 + $0x18] sm:$0xff]
  %v31 = vld [vmem:[%s1 + $0x20] sm:$0xff]
  %v32 = vld [vmem:[%s1 + $0x28] sm:$0xff]
  %v33 = vld [vmem:[%s1 + $0x30] sm:$0xff]
  %v34 = vld [vmem:[%s1 + $0x38] sm:$0xff]
  %v35 = vld [vmem:[%s1 + $0x40] sm:$0xff]
  %v36 = vld [vmem:[%s1 + $0x48] sm:$0xff]
  %v37 = vld [vmem:[%s1 + $0x50] sm:$0xff]
  %v38 = vld [vmem:[%s1 + $0x58] sm:$0xff]
  %v39 = vld [vmem:[%s1 + $0x60] sm:$0xff]
  %v40 = vld [vmem:[%s1 + $0x68] sm:$0xff]
  %v41 = vld [vmem:[%s1 + $0x70] sm:$0xff]
  %v42 = vld [vmem:[%s1 + $0x78] sm:$0xff]
  %vm43 = vcmask 261120
  %v45 = vsel %vm43, %v27, 0
  %v48 = vsel %vm43, %v28, 0
  %v51 = vsel %vm43, %v29, 0
  %v54 = vsel %vm43, %v30, 0
  %v57 = vsel %vm43, %v31, 0
  %v60 = vsel %vm43, %v32, 0
  %v63 = vsel %vm43, %v33, 0
  %v66 = vsel %vm43, %v34, 0
  %v69 = vsel %vm43, %v35, 0
  %v72 = vsel %vm43, %v36, 0
  %v75 = vsel %vm43, %v37, 0
  %v78 = vsel %vm43, %v38, 0
  %v81 = vsel %vm43, %v39, 0
  %v84 = vsel %vm43, %v40, 0
  %v87 = vsel %vm43, %v41, 0
  %v90 = vsel %vm43, %v42, 0
  %92 = vmatprep.subr.mxu0 0.0
  %93 = vmatpush1.msra.mxu0 %v23
  %94 = vmatprep.subr.mxu0 0.0
  %95 = vmatpush1.msra.mxu0 %v24
  %96 = vmatprep.subr.mxu0 0.0
  %97 = vmatpush1.msra.mxu0 %v25
  %98 = vmatprep.subr.mxu0 0.0
  %99 = vmatpush1.msra.mxu0 %v26
  %100 = vmatprep.subr.mxu0 0.0
  %101 = vmatpush1.msra.mxu0 0.0
  %102 = vmatprep.subr.mxu0 0.0
  %103 = vmatpush1.msra.mxu0 0.0
  %104 = vmatprep.subr.mxu0 0.0
  %105 = vmatpush1.msra.mxu0 0.0
  %106 = vmatprep.subr.mxu0 0.0
  %107 = vmatpush1.msra.mxu0 0.0
  %108 = vmatprep.subr.mxu0 0.0
  %109 = vmatpush1.msra.mxu0 0.0
  %110 = vmatprep.subr.mxu0 0.0
  %111 = vmatpush1.msra.mxu0 0.0
  %112 = vmatprep.subr.mxu0 0.0
  %113 = vmatpush1.msra.mxu0 0.0
  %114 = vmatprep.subr.mxu0 0.0
  %115 = vmatpush1.msra.mxu0 0.0
  %116 = vmatprep.subr.mxu0 0.0
  %117 = vmatpush1.msra.mxu0 0.0
  %118 = vmatprep.subr.mxu0 0.0
  %119 = vmatpush1.msra.mxu0 0.0
  %120 = vmatprep.subr.mxu0 0.0
  %121 = vmatpush1.msra.mxu0 0.0
  %122 = vmatprep.subr.mxu0 0.0
  %123 = vmatpush1.msra.mxu0 0.0
  %124 = vmatprep.subr.mxu0 0.0
  %125 = vmatpush1.msra.mxu0 0.0
  %126 = vmatprep.subr.mxu0 0.0
  %127 = vmatpush1.msra.mxu0 0.0
  %128 = vmatprep.subr.mxu0 0.0
  %129 = vmatpush1.msra.mxu0 0.0
  %130 = vmatprep.subr.mxu0 0.0
  %131 = vmatpush1.msra.mxu0 0.0
  %132 = vmatprep.subr.mxu0 0.0
  %133 = vmatpush1.msra.mxu0 0.0
  %134 = vmatprep.subr.mxu0 0.0
  %135 = vmatpush1.msra.mxu0 0.0
  %136 = vmatprep.subr.mxu0 0.0
  %137 = vmatpush1.msra.mxu0 0.0
  %138 = vmatprep.subr.mxu0 0.0
  %139 = vmatpush1.msra.mxu0 0.0
  %140 = vmatprep.subr.mxu0 0.0
  %141 = vmatpush1.msra.mxu0 0.0
  %142 = vmatprep.subr.mxu0 0.0
  %143 = vmatpush1.msra.mxu0 0.0
  %144 = vmatprep.subr.mxu0 0.0
  %145 = vmatpush1.msra.mxu0 0.0
  %146 = vmatprep.subr.mxu0 0.0
  %147 = vmatpush1.msra.mxu0 0.0
  %148 = vmatprep.subr.mxu0 0.0
  %149 = vmatpush1.msra.mxu0 0.0
  %150 = vmatprep.subr.mxu0 0.0
  %151 = vmatpush1.msra.mxu0 0.0
  %152 = vmatprep.subr.mxu0 0.0
  %153 = vmatpush1.msra.mxu0 0.0
  %154 = vmatprep.subr.mxu0 0.0
  %155 = vmatpush1.msra.mxu0 0.0
  %156 = vmatprep.mubr.f32.mxu0 0.0
  %157 = vmatmul.mubr.f32.gmra.mrb[0].mxu0 %v45
  %v158 = vpop.f32.mrb[0].mxu0
  %v159 = vadd.f32 0.0, %v158
  %v160 = vpop.f32.mrb[0].mxu0
  %161 = vmatprep.mubr.f32.mxu0 0.0
  %162 = vmatmul.mubr.f32.gmra.mrb[0].mxu0 %v48
  %v163 = vpop.f32.mrb[0].mxu0
  %v164 = vadd.f32 0.0, %v163
  %v165 = vpop.f32.mrb[0].mxu0
  %166 = vmatprep.mubr.f32.mxu0 0.0
  %167 = vmatmul.mubr.f32.gmra.mrb[0].mxu0 %v51
  %v168 = vpop.f32.mrb[0].mxu0
  %v169 = vadd.f32 0.0, %v168
  %v170 = vpop.f32.mrb[0].mxu0
  %171 = vmatprep.mubr.f32.mxu0 0.0
  %172 = vmatmul.mubr.f32.gmra.mrb[0].mxu0 %v54
  %v173 = vpop.f32.mrb[0].mxu0
  %v174 = vadd.f32 0.0, %v173
  %v175 = vpop.f32.mrb[0].mxu0
  %176 = vmatprep.mubr.f32.mxu0 0.0
  %177 = vmatmul.mubr.f32.gmra.mrb[0].mxu0 %v57
  %v178 = vpop.f32.mrb[0].mxu0
  %v179 = vadd.f32 0.0, %v178
  %v180 = vpop.f32.mrb[0].mxu0
  %181 = vmatprep.mubr.f32.mxu0 0.0
  %182 = vmatmul.mubr.f32.gmra.mrb[0].mxu0 %v60
  %v183 = vpop.f32.mrb[0].mxu0
  %v184 = vadd.f32 0.0, %v183
  %v185 = vpop.f32.mrb[0].mxu0
  %186 = vmatprep.mubr.f32.mxu0 0.0
  %187 = vmatmul.mubr.f32.gmra.mrb[0].mxu0 %v63
  %v188 = vpop.f32.mrb[0].mxu0
  %v189 = vadd.f32 0.0, %v188
  %v190 = vpop.f32.mrb[0].mxu0
  %191 = vmatprep.mubr.f32.mxu0 0.0
  %192 = vmatmul.mubr.f32.gmra.mrb[0].mxu0 %v66
  %v193 = vpop.f32.mrb[0].mxu0
  %v194 = vadd.f32 0.0, %v193
  %v195 = vpop.f32.mrb[0].mxu0
  %196 = vmatprep.mubr.f32.mxu0 0.0
  %197 = vmatmul.mubr.f32.gmra.mrb[0].mxu0 %v69
  %v198 = vpop.f32.mrb[0].mxu0
  %v199 = vadd.f32 0.0, %v198
  %v200 = vpop.f32.mrb[0].mxu0
  %201 = vmatprep.mubr.f32.mxu0 0.0
  %202 = vmatmul.mubr.f32.gmra.mrb[0].mxu0 %v72
  %v203 = vpop.f32.mrb[0].mxu0
  %v204 = vadd.f32 0.0, %v203
  %v205 = vpop.f32.mrb[0].mxu0
  %206 = vmatprep.mubr.f32.mxu0 0.0
  %207 = vmatmul.mubr.f32.gmra.mrb[0].mxu0 %v75
  %v208 = vpop.f32.mrb[0].mxu0
  %v209 = vadd.f32 0.0, %v208
  %v210 = vpop.f32.mrb[0].mxu0
  %211 = vmatprep.mubr.f32.mxu0 0.0
  %212 = vmatmul.mubr.f32.gmra.mrb[0].mxu0 %v78
  %v213 = vpop.f32.mrb[0].mxu0
  %v214 = vadd.f32 0.0, %v213
  %v215 = vpop.f32.mrb[0].mxu0
  %216 = vmatprep.mubr.f32.mxu0 0.0
  %217 = vmatmul.mubr.f32.gmra.mrb[0].mxu0 %v81
  %v218 = vpop.f32.mrb[0].mxu0
  %v219 = vadd.f32 0.0, %v218
  %v220 = vpop.f32.mrb[0].mxu0
  %221 = vmatprep.mubr.f32.mxu0 0.0
  %222 = vmatmul.mubr.f32.gmra.mrb[0].mxu0 %v84
  %v223 = vpop.f32.mrb[0].mxu0
  %v224 = vadd.f32 0.0, %v223
  %v225 = vpop.f32.mrb[0].mxu0
  %226 = vmatprep.mubr.f32.mxu0 0.0
  %227 = vmatmul.mubr.f32.gmra.mrb[0].mxu0 %v87
  %v228 = vpop.f32.mrb[0].mxu0
  %v229 = vadd.f32 0.0, %v228
  %v230 = vpop.f32.mrb[0].mxu0
  %231 = vmatprep.mubr.f32.mxu0 0.0
  %232 = vmatmul.mubr.f32.gmra.mrb[0].mxu0 %v90
  %v233 = vpop.f32.mrb[0].mxu0
  %v234 = vadd.f32 0.0, %v233
  %v235 = vpop.f32.mrb[0].mxu0
  %236 = vdwg.mxu0
  %v237 = vld [vmem:[%s2] sm:$0xff]
  %v238 = vld [vmem:[%s2 + $0x8] sm:$0xff]
  %v240 = vsel %vm43, %v237, 0
  %v243 = vsel %vm43, %v238, 0
  %245 = vmatprep.subr.mxu0 0.0
  %246 = vmatpush1.msra.mxu0 %v23
  %247 = vmatprep.subr.mxu0 0.0
  %248 = vmatpush1.msra.mxu0 %v24
  %249 = vmatprep.subr.mxu0 0.0
  %250 = vmatpush1.msra.mxu0 %v25
  %251 = vmatprep.subr.mxu0 0.0
  %252 = vmatpush1.msra.mxu0 %v26
  %253 = vmatprep.subr.mxu0 0.0
  %254 = vmatpush1.msra.mxu0 0.0
  %255 = vmatprep.subr.mxu0 0.0
  %256 = vmatpush1.msra.mxu0 0.0
  %257 = vmatprep.subr.mxu0 0.0
  %258 = vmatpush1.msra.mxu0 0.0
  %259 = vmatprep.subr.mxu0 0.0
  %260 = vmatpush1.msra.mxu0 0.0
  %261 = vmatprep.subr.mxu0 0.0
  %262 = vmatpush1.msra.mxu0 0.0
  %263 = vmatprep.subr.mxu0 0.0
  %264 = vmatpush1.msra.mxu0 0.0
  %265 = vmatprep.subr.mxu0 0.0
  %266 = vmatpush1.msra.mxu0 0.0
  %267 = vmatprep.subr.mxu0 0.0
  %268 = vmatpush1.msra.mxu0 0.0
  %269 = vmatprep.subr.mxu0 0.0
  %270 = vmatpush1.msra.mxu0 0.0
  %271 = vmatprep.subr.mxu0 0.0
  %272 = vmatpush1.msra.mxu0 0.0
  %273 = vmatprep.subr.mxu0 0.0
  %274 = vmatpush1.msra.mxu0 0.0
  %275 = vmatprep.subr.mxu0 0.0
  %276 = vmatpush1.msra.mxu0 0.0
  %277 = vmatprep.subr.mxu0 0.0
  %278 = vmatpush1.msra.mxu0 0.0
  %279 = vmatprep.subr.mxu0 0.0
  %280 = vmatpush1.msra.mxu0 0.0
  %281 = vmatprep.subr.mxu0 0.0
  %282 = vmatpush1.msra.mxu0 0.0
  %283 = vmatprep.subr.mxu0 0.0
  %284 = vmatpush1.msra.mxu0 0.0
  %285 = vmatprep.subr.mxu0 0.0
  %286 = vmatpush1.msra.mxu0 0.0
  %287 = vmatprep.subr.mxu0 0.0
  %288 = vmatpush1.msra.mxu0 0.0
  %289 = vmatprep.subr.mxu0 0.0
  %290 = vmatpush1.msra.mxu0 0.0
  %291 = vmatprep.subr.mxu0 0.0
  %292 = vmatpush1.msra.mxu0 0.0
  %293 = vmatprep.subr.mxu0 0.0
  %294 = vmatpush1.msra.mxu0 0.0
  %295 = vmatprep.subr.mxu0 0.0
  %296 = vmatpush1.msra.mxu0 0.0
  %297 = vmatprep.subr.mxu0 0.0
  %298 = vmatpush1.msra.mxu0 0.0
  %299 = vmatprep.subr.mxu0 0.0
  %300 = vmatpush1.msra.mxu0 0.0
  %301 = vmatprep.subr.mxu0 0.0
  %302 = vmatpush1.msra.mxu0 0.0
  %303 = vmatprep.subr.mxu0 0.0
  %304 = vmatpush1.msra.mxu0 0.0
  %305 = vmatprep.subr.mxu0 0.0
  %306 = vmatpush1.msra.mxu0 0.0
  %307 = vmatprep.subr.mxu0 0.0
  %308 = vmatpush1.msra.mxu0 0.0
  %309 = vmatprep.mubr.f32.mxu0 0.0
  %310 = vmatmul.mubr.f32.gmra.mrb[0].mxu0 %v240
  %v311 = vpop.f32.mrb[0].mxu0
  %v312 = vadd.f32 0.0, %v311
  %v313 = vpop.f32.mrb[0].mxu0
  %314 = vmatprep.mubr.f32.mxu0 0.0
  %315 = vmatmul.mubr.f32.gmra.mrb[0].mxu0 %v243
  %v316 = vpop.f32.mrb[0].mxu0
  %v317 = vadd.f32 0.0, %v316
  %v318 = vpop.f32.mrb[0].mxu0
  %319 = vdwg.mxu0
  %v320 = vld [vmem:[%s3] sm:$0xf]
  %v321 = vmul.f32 %v159, %v159
  %v322 = vmul.f32 %v164, %v164
  %v323 = vmul.f32 %v169, %v169
  %v324 = vmul.f32 %v174, %v174
  %v325 = vmul.f32 %v179, %v179
  %v326 = vmul.f32 %v184, %v184
  %v327 = vmul.f32 %v189, %v189
  %v328 = vmul.f32 %v194, %v194
  %v329 = vmul.f32 %v199, %v199
  %v330 = vmul.f32 %v204, %v204
  %v331 = vmul.f32 %v209, %v209
  %v332 = vmul.f32 %v214, %v214
  %v333 = vmul.f32 %v219, %v219
  %v334 = vmul.f32 %v224, %v224
  %v335 = vmul.f32 %v229, %v229
  %v336 = vmul.f32 %v234, %v234
  %337 = vmatprep.subr.mxu0 0.0
  %338 = vmatpush1.msra.mxu0 %v321
  %339 = vmatprep.subr.mxu0 0.0
  %340 = vmatpush1.msra.mxu0 %v322
  %341 = vmatprep.subr.mxu0 0.0
  %342 = vmatpush1.msra.mxu0 %v323
  %343 = vmatprep.subr.mxu0 0.0
  %344 = vmatpush1.msra.mxu0 %v324
  %345 = vmatprep.subr.mxu0 0.0
  %346 = vmatpush1.msra.mxu0 %v325
  %347 = vmatprep.subr.mxu0 0.0
  %348 = vmatpush1.msra.mxu0 %v326
  %349 = vmatprep.subr.mxu0 0.0
  %350 = vmatpush1.msra.mxu0 %v327
  %351 = vmatprep.subr.mxu0 0.0
  %352 = vmatpush1.msra.mxu0 %v328
  %353 = vmatprep.subr.mxu0 0.0
  %354 = vmatpush1.msra.mxu0 %v329
  %355 = vmatprep.subr.mxu0 0.0
  %356 = vmatpush1.msra.mxu0 %v330
  %357 = vmatprep.subr.mxu0 0.0
  %358 = vmatpush1.msra.mxu0 %v331
  %359 = vmatprep.subr.mxu0 0.0
  %360 = vmatpush1.msra.mxu0 %v332
  %361 = vmatprep.subr.mxu0 0.0
  %362 = vmatpush1.msra.mxu0 %v333
  %363 = vmatprep.subr.mxu0 0.0
  %364 = vmatpush1.msra.mxu0 %v334
  %365 = vmatprep.subr.mxu0 0.0
  %366 = vmatpush1.msra.mxu0 %v335
  %367 = vmatprep.subr.mxu0 0.0
  %368 = vmatpush1.msra.mxu0 %v336
  %369 = vmatprep.subr.mxu0 0.0
  %370 = vmatpush1.msra.mxu0 0.0
  %371 = vmatprep.subr.mxu0 0.0
  %372 = vmatpush1.msra.mxu0 0.0
  %373 = vmatprep.subr.mxu0 0.0
  %374 = vmatpush1.msra.mxu0 0.0
  %375 = vmatprep.subr.mxu0 0.0
  %376 = vmatpush1.msra.mxu0 0.0
  %377 = vmatprep.subr.mxu0 0.0
  %378 = vmatpush1.msra.mxu0 0.0
  %379 = vmatprep.subr.mxu0 0.0
  %380 = vmatpush1.msra.mxu0 0.0
  %381 = vmatprep.subr.mxu0 0.0
  %382 = vmatpush1.msra.mxu0 0.0
  %383 = vmatprep.subr.mxu0 0.0
  %384 = vmatpush1.msra.mxu0 0.0
  %385 = vmatprep.subr.mxu0 0.0
  %386 = vmatpush1.msra.mxu0 0.0
  %387 = vmatprep.subr.mxu0 0.0
  %388 = vmatpush1.msra.mxu0 0.0
  %389 = vmatprep.subr.mxu0 0.0
  %390 = vmatpush1.msra.mxu0 0.0
  %391 = vmatprep.subr.mxu0 0.0
  %392 = vmatpush1.msra.mxu0 0.0
  %393 = vmatprep.subr.mxu0 0.0
  %394 = vmatpush1.msra.mxu0 0.0
  %395 = vmatprep.subr.mxu0 0.0
  %396 = vmatpush1.msra.mxu0 0.0
  %397 = vmatprep.subr.mxu0 0.0
  %398 = vmatpush1.msra.mxu0 0.0
  %399 = vmatprep.subr.mxu0 0.0
  %400 = vmatpush1.msra.mxu0 0.0
  %401 = vmatprep.mubr.f32.mxu0 0.0
  %402 = vmatmul.mubr.f32.gmra.mrb[0].mxu0 %v320
  %v403 = vpop.f32.mrb[0].mxu0
  %v404 = vadd.f32 1e-05, %v403
  %v405 = vpop.f32.mrb[0].mxu0
  %406 = vdwg.mxu0
  %v407 = vrsqrt.pop %v404
  %v408 = vld [vmem:[%s4] sm:$0xff]
  %v409 = vld [vmem:[%s4 + $0x8] sm:$0xff]
  %vm410 = vcmask 31744
  %v412 = vsel %vm410, %v408, 0
  %v415 = vsel %vm410, %v409, 0
  %vm417 = vcmask 1043456
  %v419 = vsel %vm417, %v407, 0
  %421 = vmatprep.subr.mxu0 0.0
  %422 = vmatpush1.msra.mxu0 %v419
  %423 = vmatprep.subr.mxu0 0.0
  %424 = vmatpush1.msra.mxu0 0.0
  %425 = vmatprep.subr.mxu0 0.0
  %426 = vmatpush1.msra.mxu0 0.0
  %427 = vmatprep.subr.mxu0 0.0
  %428 = vmatpush1.msra.mxu0 0.0
  %429 = vmatprep.subr.mxu0 0.0
  %430 = vmatpush1.msra.mxu0 0.0
  %431 = vmatprep.subr.mxu0 0.0
  %432 = vmatpush1.msra.mxu0 0.0
  %433 = vmatprep.subr.mxu0 0.0
  %434 = vmatpush1.msra.mxu0 0.0
  %435 = vmatprep.subr.mxu0 0.0
  %436 = vmatpush1.msra.mxu0 0.0
  %437 = vmatprep.subr.mxu0 0.0
  %438 = vmatpush1.msra.mxu0 0.0
  %439 = vmatprep.subr.mxu0 0.0
  %440 = vmatpush1.msra.mxu0 0.0
  %441 = vmatprep.subr.mxu0 0.0
  %442 = vmatpush1.msra.mxu0 0.0
  %443 = vmatprep.subr.mxu0 0.0
  %444 = vmatpush1.msra.mxu0 0.0
  %445 = vmatprep.subr.mxu0 0.0
  %446 = vmatpush1.msra.mxu0 0.0
  %447 = vmatprep.subr.mxu0 0.0
  %448 = vmatpush1.msra.mxu0 0.0
  %449 = vmatprep.subr.mxu0 0.0
  %450 = vmatpush1.msra.mxu0 0.0
  %451 = vmatprep.subr.mxu0 0.0
  %452 = vmatpush1.msra.mxu0 0.0
  %453 = vmatprep.subr.mxu0 0.0
  %454 = vmatpush1.msra.mxu0 0.0
  %455 = vmatprep.subr.mxu0 0.0
  %456 = vmatpush1.msra.mxu0 0.0
  %457 = vmatprep.subr.mxu0 0.0
  %458 = vmatpush1.msra.mxu0 0.0
  %459 = vmatprep.subr.mxu0 0.0
  %460 = vmatpush1.msra.mxu0 0.0
  %461 = vmatprep.subr.mxu0 0.0
  %462 = vmatpush1.msra.mxu0 0.0
  %463 = vmatprep.subr.mxu0 0.0
  %464 = vmatpush1.msra.mxu0 0.0
  %465 = vmatprep.subr.mxu0 0.0
  %466 = vmatpush1.msra.mxu0 0.0
  %467 = vmatprep.subr.mxu0 0.0
  %468 = vmatpush1.msra.mxu0 0.0
  %469 = vmatprep.subr.mxu0 0.0
  %470 = vmatpush1.msra.mxu0 0.0
  %471 = vmatprep.subr.mxu0 0.0
  %472 = vmatpush1.msra.mxu0 0.0
  %473 = vmatprep.subr.mxu0 0.0
  %474 = vmatpush1.msra.mxu0 0.0
  %475 = vmatprep.subr.mxu0 0.0
  %476 = vmatpush1.msra.mxu0 0.0
  %477 = vmatprep.subr.mxu0 0.0
  %478 = vmatpush1.msra.mxu0 0.0
  %479 = vmatprep.subr.mxu0 0.0
  %480 = vmatpush1.msra.mxu0 0.0
  %481 = vmatprep.subr.mxu0 0.0
  %482 = vmatpush1.msra.mxu0 0.0
  %483 = vmatprep.subr.mxu0 0.0
  %484 = vmatpush1.msra.mxu0 0.0
  %485 = vmatprep.mubr.f32.mxu0 0.0
  %486 = vmatmul.mubr.f32.gmra.mrb[0].mxu0 %v412
  %v487 = vpop.f32.mrb[0].mxu0
  %v488 = vadd.f32 0.0, %v487
  %v489 = vpop.f32.mrb[0].mxu0
  %490 = vmatprep.mubr.f32.mxu0 0.0
  %491 = vmatmul.mubr.f32.gmra.mrb[0].mxu0 %v415
  %v492 = vpop.f32.mrb[0].mxu0
  %v493 = vadd.f32 0.0, %v492
  %v494 = vpop.f32.mrb[0].mxu0
  %495 = vdwg.mxu0
  %v496 = vmul.f32 %v488, %v312
  %v497 = vmul.f32 %v493, %v317
  %v498 = vld [vmem:[%s5] sm:$0xff]
  %v499 = vld [vmem:[%s5 + $0x8] sm:$0xff]
  %501 = vset.pattern.permute.xlu0 0
  %502 = vperm.xlu0 %501, %v498
  %v503 = vpop.permute.xlu0 %502
  %506 = vset.pattern.permute.xlu0 0
  %507 = vperm.xlu0 %506, %v499
  %v508 = vpop.permute.xlu0 %507
  %v510 = vadd.f32 %v496, %v503
  %v511 = vadd.f32 %v497, %v508
  %512 = vst [vmem:[%s6] sm:$0xff] %v510
  %513 = vst [vmem:[%s6 + $0x8] sm:$0xff] %v511
  // Predicated region
  $region26: #{patch_expansion.1} parent=0 // pred_check
    _
  $region27: #{patch_expansion.1} parent=0 // pred_check_branch
    %515 = sbr.rel (0) target = $region29
  $region28: #{patch_expansion.1} parent=0 // pred_region
    _
  $region29: #{patch_expansion.1} parent=0 // pred_fallthru
    _
  // Predicated region
  $region30: #{patch_expansion.1} parent=0 // pred_check
    _
  $region31: #{patch_expansion.1} parent=0 // pred_check_branch
    %517 = sbr.rel (0) target = $region33
  $region32: #{patch_expansion.1} parent=0 // pred_region
    _
  $region33: #{patch_expansion.1} parent=0 // pred_fallthru
    _

</llo_original>
